<compile_context>
chip_gen: v7x
topology: tpu7x:2x2x1
jax: 0.10.0
libtpu: 0.0.40
codegen_flags: <defaults>
</compile_context>

<pallas_src>
import functools

import jax
import jax.numpy as jnp
from jax.experimental import pallas as pl
from jax.experimental.pallas import tpu as pltpu

LANES = 128       # lane width (vreg minor dim)
SUBLANES = 8      # sublane granularity
TM_MAX = 2048     # max rows per block: 2048*128*4B = 1 MiB f32 per stream


def _bce_block(x_ref, t_ref, w_ref, o_ref, *, full_rows, rem_lanes, need_mask):
    """One grid step: partial sum of weight * bce_with_logits over this block."""
    x = x_ref[...].astype(jnp.float32)
    t = t_ref[...].astype(jnp.float32)
    # Numerically stable BCE-with-logits (matches PyTorch):
    #   max(x, 0) - x*t + log(1 + exp(-|x|))
    loss = jnp.maximum(x, 0.0) - x * t + jnp.log1p(jnp.exp(-jnp.abs(x)))
    if w_ref is not None:
        loss = loss * w_ref[...].astype(jnp.float32)

    tm, lanes = loss.shape
    if need_mask:
        # Zero out elements past the original element count (lane-alignment
        # tail / grid overhang).  Pure VPU work, only traced when needed.
        r = jax.lax.broadcasted_iota(jnp.int32, (tm, lanes), 0)
        grow = pl.program_id(0) * tm + r          # global row index
        mask = grow < full_rows
        if rem_lanes:
            c = jax.lax.broadcasted_iota(jnp.int32, (tm, lanes), 1)
            mask = mask | ((grow == full_rows) & (c < rem_lanes))
        loss = jnp.where(mask, loss, 0.0)

    # Per-block partial sum: VALU adds across vregs + one sublane reduce,
    # one lane-dense (1,1,128) store per block -- nothing scalar in the loop.
    o_ref[...] = jnp.sum(loss, axis=0, keepdims=True).reshape(1, 1, lanes)


def _bce_kernel_weighted(x_ref, t_ref, w_ref, o_ref, **static):
    _bce_block(x_ref, t_ref, w_ref, o_ref, **static)


def _bce_kernel_unweighted(x_ref, t_ref, o_ref, **static):
    _bce_block(x_ref, t_ref, None, o_ref, **static)


@jax.jit
def bce_weighted_loss(inp, target, weight=None):
    """Equivalent of BCEWeightedLoss(logits=True)(inp, target, weight)."""
    # TODO(synk): logits=False branch (plain BCE on probabilities) not implemented.
    n = inp.size
    out_dtype = inp.dtype

    streams = [inp.reshape(-1), target.reshape(-1)]
    if weight is not None:
        # TODO(synk): small broadcastable weights (e.g. per-channel) could be fed
        # via SMEM / index_map instead of materializing a full-size array.
        streams.append(jnp.broadcast_to(weight, inp.shape).reshape(-1))

    # Pad only when the element count is not lane-aligned (static check;
    # at most 127 elements, skipped entirely otherwise).
    pad = (-n) % LANES
    if pad:
        streams = [jnp.pad(s, (0, pad)) for s in streams]
    rows = (n + pad) // LANES

    # Rows per block: multiple of the sublane count, capped at TM_MAX.
    tm = min(TM_MAX, ((rows + SUBLANES - 1) // SUBLANES) * SUBLANES)
    nb = (rows + tm - 1) // tm                    # grid size (static)
    need_mask = (nb * tm * LANES) != n            # static

    streams = [s.reshape(rows, LANES) for s in streams]

    kernel_fn = _bce_kernel_weighted if weight is not None else _bce_kernel_unweighted
    kernel = functools.partial(kernel_fn, full_rows=n // LANES,
                               rem_lanes=n % LANES, need_mask=need_mask)

    in_spec = pl.BlockSpec((tm, LANES), lambda i: (i, 0))
    partials = pl.pallas_call(
        kernel,
        out_shape=jax.ShapeDtypeStruct((nb, 1, LANES), jnp.float32),
        grid_spec=pltpu.PrefetchScalarGridSpec(
            num_scalar_prefetch=0,
            grid=(nb,),
            in_specs=[in_spec] * len(streams),
            out_specs=pl.BlockSpec((1, 1, LANES), lambda i: (i, 0, 0)),
        ),
        compiler_params=pltpu.CompilerParams(
            dimension_semantics=("parallel",)),
    )(*streams)

    mean = jnp.sum(partials, dtype=jnp.float32) / jnp.float32(n)
    return mean.astype(out_dtype)


if __name__ == "__main__":
    key = jax.random.PRNGKey(0)
    k1, k2, k3 = jax.random.split(key, 3)

    B, C, H, W = 2, 4, 16, 16
    logits = jax.random.normal(k1, (B, C, H, W), dtype=jnp.float32)
    target = (jax.random.uniform(k2, (B, C, H, W)) > 0.5).astype(jnp.float32)
    weight = jax.random.uniform(k3, (B, C, H, W), dtype=jnp.float32) + 0.5

    # Run kernel (weighted and unweighted paths).
    loss_w = jax.block_until_ready(bce_weighted_loss(logits, target, weight))
    loss_u = jax.block_until_ready(bce_weighted_loss(logits, target, None))

    # Pure-JAX reference check.
    def ref(x, t, w):
        l = jnp.maximum(x, 0.0) - x * t + jnp.log1p(jnp.exp(-jnp.abs(x)))
        if w is not None:
            l = l * w
        return jnp.mean(l)

    assert jnp.allclose(loss_w, ref(logits, target, weight), atol=1e-5, rtol=1e-5)
    assert jnp.allclose(loss_u, ref(logits, target, None), atol=1e-5, rtol=1e-5)

    print("KERNEL_OK")
</pallas_src>

<mosaic_0001>
module attributes {stable_mosaic.version = 11 : i64} {
  func.func @_bce_kernel_weighted(%arg0: i32, %arg1: memref<16x128xf32, #tpu.memory_space<vmem>>, %arg2: memref<16x128xf32, #tpu.memory_space<vmem>>, %arg3: memref<16x128xf32, #tpu.memory_space<vmem>>, %arg4: memref<1x1x128xf32, #tpu.memory_space<vmem>>) attributes {dimension_semantics = [#tpu.dimension_semantics<parallel>], iteration_bounds = array<i64: 1>, scalar_prefetch = 0 : i64, scratch_operands = 0 : i64, tpu.core_type = #tpu.core_type<tc>, window_params = [{transform_indices = @transform_0, window_bounds = array<i64: 16, 128>}, {transform_indices = @transform_1, window_bounds = array<i64: 16, 128>}, {transform_indices = @transform_2, window_bounds = array<i64: 16, 128>}, {transform_indices = @transform_3, window_bounds = array<i64: 1, 1, 128>}]} {
    %c0 = arith.constant 0 : index
    %c0_0 = arith.constant 0 : index
    %0 = vector.load %arg1[%c0, %c0_0] : memref<16x128xf32, #tpu.memory_space<vmem>>, vector<16x128xf32>
    %c0_1 = arith.constant 0 : index
    %c0_2 = arith.constant 0 : index
    %1 = vector.load %arg2[%c0_1, %c0_2] : memref<16x128xf32, #tpu.memory_space<vmem>>, vector<16x128xf32>
    %cst = arith.constant 0.000000e+00 : f32
    %2 = vector.broadcast %cst : f32 to vector<16x128xf32>
    %3 = arith.maximumf %0, %2 : vector<16x128xf32>
    %4 = arith.mulf %0, %1 : vector<16x128xf32>
    %5 = arith.subf %3, %4 : vector<16x128xf32>
    %6 = math.absf %0 : vector<16x128xf32>
    %cst_3 = arith.constant 0.000000e+00 : f32
    %7 = vector.broadcast %cst_3 : f32 to vector<16x128xf32>
    %8 = arith.subf %7, %6 : vector<16x128xf32>
    %9 = math.exp %8 : vector<16x128xf32>
    %10 = math.log1p %9 : vector<16x128xf32>
    %11 = arith.addf %5, %10 : vector<16x128xf32>
    %c0_4 = arith.constant 0 : index
    %c0_5 = arith.constant 0 : index
    %12 = vector.load %arg3[%c0_4, %c0_5] : memref<16x128xf32, #tpu.memory_space<vmem>>, vector<16x128xf32>
    %13 = arith.mulf %11, %12 : vector<16x128xf32>
    %cst_6 = arith.constant dense<0.000000e+00> : vector<128xf32>
    %14 = vector.multi_reduction <add>, %13, %cst_6 [0] : vector<16x128xf32> to vector<128xf32>
    %15 = vector.shape_cast %14 : vector<128xf32> to vector<1x128xf32>
    %16 = vector.shape_cast %15 : vector<1x128xf32> to vector<1x1x128xf32>
    %c0_7 = arith.constant 0 : index
    %c0_8 = arith.constant 0 : index
    %c0_9 = arith.constant 0 : index
    %17 = vector.load %arg4[%c0_7, %c0_8, %c0_9] : memref<1x1x128xf32, #tpu.memory_space<vmem>>, vector<1x1x128xf32>
    tpu.vector_store %arg4[%c0_7, %c0_8, %c0_9], %16 {strides = array<i32>} : memref<1x1x128xf32, #tpu.memory_space<vmem>>, vector<1x1x128xf32>,
    return
  }
  func.func @transform_0(%arg0: i32) -> (i32, i32) {
    %c0_i32 = arith.constant 0 : i32
    %c0_i32_0 = arith.constant 0 : i32
    return %arg0, %c0_i32 : i32, i32
  }
  func.func @transform_1(%arg0: i32) -> (i32, i32) {
    %c0_i32 = arith.constant 0 : i32
    %c0_i32_0 = arith.constant 0 : i32
    return %arg0, %c0_i32 : i32, i32
  }
  func.func @transform_2(%arg0: i32) -> (i32, i32) {
    %c0_i32 = arith.constant 0 : i32
    %c0_i32_0 = arith.constant 0 : i32
    return %arg0, %c0_i32 : i32, i32
  }
  func.func @transform_3(%arg0: i32) -> (i32, i32, i32) {
    %c0_i32 = arith.constant 0 : i32
    %c0_i32_0 = arith.constant 0 : i32
    %c0_i32_1 = arith.constant 0 : i32
    return %arg0, %c0_i32, %c0_i32_0 : i32, i32, i32
  }
}

</mosaic_0001>

<llo_original>
// kernel: bce_weighted_loss.1
$region0: #{bce_weighted_loss.1}
  #allocation0 [shape = 'u32[]', space=smem, size = 0x4, offset = 0x4, fixed_abs, tag = 'smem constant byte address 0x4 - core index']
  #allocation1 [shape = 'u32[144,128]{1,0:T(1,128)}', space=vmem, size = 0x12000, scoped, tag = 'internal scratch']
  %s0 = inlined_call_operand.vmem [shape: f32[16,128], index: 0, kind: input, shape index: {}]
  %s1 = inlined_call_operand.vmem [shape: f32[16,128], index: 1, kind: input, shape index: {}]
  %s2 = inlined_call_operand.vmem [shape: f32[16,128], index: 2, kind: input, shape index: {}]
  %s3 = inlined_call_operand.vmem [shape: f32[1,1,128], index: 3, kind: output, shape index: {}]
  %s4 = sld [smem:[#allocation0]]
  $region22: #{bce_weighted_loss.1} parent=0
    _
  %s6 = ssub.s32 1, %s4
  %s7 = scalar_select 0, %s6, %s4
  // Predicated region
  $region2: #{bce_weighted_loss.1} parent=0 // pred_check
    _
  $region3: #{bce_weighted_loss.1} parent=0 // pred_check_branch
    %9 = sbr.rel (0) target = $region5
  $region4: #{bce_weighted_loss.1} parent=0 // pred_region
    _
  $region5: #{bce_weighted_loss.1} parent=0 // pred_fallthru
    _
  // Predicated region
  $region6: #{bce_weighted_loss.1} parent=0 // pred_check
    _
  $region7: #{bce_weighted_loss.1} parent=0 // pred_check_branch
    %11 = sbr.rel (0) target = $region9
  $region8: #{bce_weighted_loss.1} parent=0 // pred_region
    _
  $region9: #{bce_weighted_loss.1} parent=0 // pred_fallthru
    _
  // Predicated region
  $region10: #{bce_weighted_loss.1} parent=0 // pred_check
    _
  $region11: #{bce_weighted_loss.1} parent=0 // pred_check_branch
    %13 = sbr.rel (0) target = $region13
  $region12: #{bce_weighted_loss.1} parent=0 // pred_region
    _
  $region13: #{bce_weighted_loss.1} parent=0 // pred_fallthru
    _
  %v14 = vld [vmem:[%s0] sm:$0xff]
  %v15 = vld [vmem:[%s0 + $0x8] sm:$0xff]
  %v16 = vld [vmem:[%s1] sm:$0xff]
  %v17 = vld [vmem:[%s1 + $0x8] sm:$0xff]
  %v18 = vmax.f32 %v14, 0.0
  %v19 = vmax.f32 %v15, 0.0
  %v20 = vmul.f32 %v14, %v16
  %v21 = vmul.f32 %v15, %v17
  %v22 = vsub.f32 %v18, %v20
  %v23 = vsub.f32 %v19, %v21
  %v24 = vand.u32 2147483647, %v14
  %v25 = vand.u32 2147483647, %v15
  %v26 = vsub.f32 0.0, %v24
  %v27 = vsub.f32 0.0, %v25
  %v28 = vmul.f32 %v26, 1.442695
  %v29 = vpow.pop %v28
  %v30 = vmul.f32 %v27, 1.442695
  %v31 = vpow.pop %v30
  %v32 = vadd.f32 %v29, 1.0
  %v33 = vlog2.pop %v32
  %v34 = vmul.f32 %v33, 0.6931472
  %v35 = vmul.f32 -0.5, %v29
  %v36 = vadd.f32 %v35, 1.0
  %v37 = vmul.f32 %v36, %v29
  %v38 = vand.u32 2147483647, %v29
  %vm39 = vcmp.lt.f32.partialorder %v38, 0.0004427343
  %v40 = vsel %vm39, %v37, %v34
  %v41 = vadd.f32 %v31, 1.0
  %v42 = vlog2.pop %v41
  %v43 = vmul.f32 %v42, 0.6931472
  %v44 = vmul.f32 -0.5, %v31
  %v45 = vadd.f32 %v44, 1.0
  %v46 = vmul.f32 %v45, %v31
  %v47 = vand.u32 2147483647, %v31
  %vm48 = vcmp.lt.f32.partialorder %v47, 0.0004427343
  %v49 = vsel %vm48, %v46, %v43
  %v50 = vadd.f32 %v22, %v40
  %v51 = vadd.f32 %v23, %v49
  %v52 = vld [vmem:[%s2] sm:$0xff]
  %v53 = vld [vmem:[%s2 + $0x8] sm:$0xff]
  %v54 = vmul.f32 %v50, %v52
  %v55 = vmul.f32 %v51, %v53
  %v56 = vadd.f32 %v54, %v55
  %v57 = vrot.slane %v56, 4
  %v58 = vadd.f32 %v56, %v57
  %v59 = vrot.slane %v58, 2
  %v60 = vadd.f32 %v58, %v59
  %v61 = vrot.slane %v60, 1
  %v62 = vadd.f32 %v60, %v61
  %63 = vst [vmem:[%s3] sm:$0x1] %v62
  // Predicated region
  $region14: #{bce_weighted_loss.1} parent=0 // pred_check
    _
  $region15: #{bce_weighted_loss.1} parent=0 // pred_check_branch
    %65 = sbr.rel (0) target = $region17
  $region16: #{bce_weighted_loss.1} parent=0 // pred_region
    _
  $region17: #{bce_weighted_loss.1} parent=0 // pred_fallthru
    _
  // Predicated region
  $region18: #{bce_weighted_loss.1} parent=0 // pred_check
    _
  $region19: #{bce_weighted_loss.1} parent=0 // pred_check_branch
    %67 = sbr.rel (0) target = $region21
  $region20: #{bce_weighted_loss.1} parent=0 // pred_region
    _
  $region21: #{bce_weighted_loss.1} parent=0 // pred_fallthru
    _

</llo_original>
